<compile_context>
chip_gen: v5e
topology: v5e:2x2
jax: 0.10.0
libtpu: 0.0.40
codegen_flags: <defaults>
</compile_context>

<pallas_src>
import functools

import jax
import jax.numpy as jnp
from jax.experimental import pallas as pl
from jax.experimental.pallas import tpu as pltpu

BN_EPS = 1e-5
GIN_EPS = 0.0          # GINConv default eps (not trainable)
LANE = 128             # lane width / feature padding
NODE_PAD = 16          # bf16 sublane tile -> node-dim padding multiple


def _round_up(v, m):
    return (v + m - 1) // m * m


# ------------------------------ Pallas kernel --------------------------------


def gin_fused_kernel(a_ref, x_ref, mask_ref, w1_ref, vec_ref, w2_ref, out_ref,
                     *, n_layers: int, inv_n: float):
    """All GIN layers + (folded) DecoderLinear; A loaded once, h stays in VMEM."""
    a = a_ref[...]        # bf16 [Np, Np]; already contains the (1+eps)*I term
    mask = mask_ref[...]  # f32  [Np, 1]; 1.0 for real nodes, 0.0 for padding
    h = x_ref[...]        # bf16 [Np, P]
    hz = None
    for l in range(n_layers):  # static unroll; n_layers is small
        vec = vec_ref[l]       # f32 [8, P]: rows = b1, gamma, beta, b2
        # GIN aggregation: (A + (1+eps)I) @ h   (self term folded into A)
        agg = jnp.dot(a, h, preferred_element_type=jnp.float32)
        # Linear(in -> hidden)
        z = jnp.dot(agg.astype(jnp.bfloat16), w1_ref[l],
                    preferred_element_type=jnp.float32) + vec[0:1, :]
        # BatchNorm1d, train-mode stats over the REAL nodes only: mask once,
        # one-pass moments, gamma/rsqrt folded into a single scale/shift (f32).
        z = z * mask
        mean = jnp.sum(z, axis=0, keepdims=True) * inv_n
        ex2 = jnp.sum(z * z, axis=0, keepdims=True) * inv_n
        var = ex2 - mean * mean
        scale = vec[1:2, :] * jax.lax.rsqrt(var + BN_EPS)
        shift = vec[2:3, :] - mean * scale
        # BN affine + ReLU
        z = jnp.maximum(z * scale + shift, 0.0)
        # Linear(hidden -> out); last layer's W2/b2 also carry the folded
        # DecoderLinear columns, so hz = [h | out] on the last iteration.
        hz = jnp.dot(z.astype(jnp.bfloat16), w2_ref[l],
                     preferred_element_type=jnp.float32) + vec[3:4, :]
        if l < n_layers - 1:  # trailing ReLU on every GIN layer except the last
            h = jnp.maximum(hz, 0.0).astype(jnp.bfloat16)
    out_ref[...] = hz


# --------------------- One-time parameter packing (hoisted) ------------------


def pack_gin_params(params):
    """Pad/stack all weights once, outside the per-call forward path."""
    layers = params["layers"]
    wd, bd = params["out"]
    n_layers = len(layers)
    f = layers[0][0].shape[0]
    hidden = layers[0][0].shape[1]
    emb = layers[-1][4].shape[1]
    out_dim = wd.shape[1]
    p = _round_up(max(f, hidden, emb + out_dim), LANE)
    assert emb + out_dim <= p

    def pad_mat(w):
        return jnp.zeros((p, p), jnp.float32).at[:w.shape[0], :w.shape[1]].set(w)

    def pad_vec(v, fill=0.0):
        return jnp.full((p,), fill, jnp.float32).at[:v.shape[-1]].set(v.reshape(-1))

    w1s, w2s, vecs = [], [], []
    for l, (w1, b1, g, bt, w2, b2) in enumerate(layers):
        if l == n_layers - 1:
            # Fold DecoderLinear into the last layer's second Linear:
            #   out = z @ (w2 @ wd) + (b2 @ wd + bd)
            w2 = jnp.concatenate([w2, w2 @ wd], axis=1)
            b2 = jnp.concatenate([b2, b2 @ wd + bd], axis=1)
        w1s.append(pad_mat(w1))
        w2s.append(pad_mat(w2))
        # Pack the four per-layer [1,P] vectors into one [8,P] f32 tile
        # (rows: b1, gamma, beta, b2; rows 4-7 are sublane-tile padding).
        vec = jnp.zeros((8, p), jnp.float32)
        vec = vec.at[0].set(pad_vec(b1))
        vec = vec.at[1].set(pad_vec(g, 1.0))
        vec = vec.at[2].set(pad_vec(bt))
        vec = vec.at[3].set(pad_vec(b2))
        vecs.append(vec)

    packed = {
        "w1": jnp.stack(w1s).astype(jnp.bfloat16),   # [L, P, P] bf16
        "vec": jnp.stack(vecs),                      # [L, 8, P] f32
        "w2": jnp.stack(w2s).astype(jnp.bfloat16),   # [L, P, P] bf16
    }
    return packed, (f, hidden, emb, out_dim, p)


# ------------------------------ Host wrapper ---------------------------------


def gin_forward(packed, x, edge_index, *, n_layers, emb, out_dim):
    """Mirrors GIN.forward(x, edge_index) -> (out, h)."""
    n, f = x.shape
    p = packed["w1"].shape[-1]
    n_pad = _round_up(n, NODE_PAD)

    # Dense adjacency with the (1+eps) self term folded in.
    # NOTE: bf16 holds integer multiplicities exactly only up to 256/entry.
    src, dst = edge_index[0], edge_index[1]
    diag = jnp.arange(n)
    a = (jnp.zeros((n_pad, n_pad), jnp.float32)
         .at[dst, src].add(1.0)
         .at[diag, diag].add(1.0 + GIN_EPS)).astype(jnp.bfloat16)

    x_pad = jnp.zeros((n_pad, p), jnp.bfloat16).at[:n, :f].set(
        x.astype(jnp.bfloat16))
    mask = (jnp.arange(n_pad) < n).astype(jnp.float32)[:, None]

    # Explicit VMEM budget derived from the actual padded buffers (+ headroom
    # for compiler scratch); scoped defaults differ per generation
    # (v5e: 16 MiB, v6e/v7x: 32 MiB).
    buf_bytes = (a.size * 2 + x_pad.size * 2 + mask.size * 4 +
                 packed["w1"].size * 2 + packed["w2"].size * 2 +
                 packed["vec"].size * 4 + n_pad * p * 4)
    vmem_limit = int(min(128 << 20, 4 * buf_bytes + (4 << 20)))

    kern = functools.partial(gin_fused_kernel, n_layers=n_layers, inv_n=1.0 / n)
    vmem = pl.BlockSpec(memory_space=pltpu.MemorySpace.VMEM)
    fused = pl.pallas_call(
        kern,
        out_shape=jax.ShapeDtypeStruct((n_pad, p), jnp.float32),
        in_specs=[vmem] * 6,
        out_specs=vmem,
        compiler_params=pltpu.CompilerParams(vmem_limit_bytes=vmem_limit),
    )(a, x_pad, mask, packed["w1"], packed["vec"], packed["w2"])

    h = fused[:n, :emb]
    out = fused[:n, emb:emb + out_dim]
    return out, h


# --------------------------- Parameter construction --------------------------


def _init_linear(key, fan_in, fan_out):
    """Deterministic PyTorch-style Linear init (uniform +/- 1/sqrt(fan_in))."""
    kw, kb = jax.random.split(key)
    bound = 1.0 / float(fan_in) ** 0.5
    w = jax.random.uniform(kw, (fan_in, fan_out), jnp.float32, -bound, bound)
    b = jax.random.uniform(kb, (1, fan_out), jnp.float32, -bound, bound)
    return w, b


def _init_gin_mlp(key, in_dim, hidden_dim, out_dim):
    k1, k2 = jax.random.split(key)
    w1, b1 = _init_linear(k1, in_dim, hidden_dim)
    gamma = jnp.ones((1, hidden_dim), jnp.float32)   # BatchNorm1d weight
    beta = jnp.zeros((1, hidden_dim), jnp.float32)   # BatchNorm1d bias
    w2, b2 = _init_linear(k2, hidden_dim, out_dim)
    return (w1, b1, gamma, beta, w2, b2)


def init_gin_params(key, num_features, hidden_dim, embedding_dim, n_layers):
    keys = jax.random.split(key, n_layers + 1)
    layers = []
    if n_layers == 1:
        layers.append(_init_gin_mlp(keys[0], num_features, hidden_dim,
                                    embedding_dim))
    else:
        layers.append(_init_gin_mlp(keys[0], num_features, hidden_dim,
                                    hidden_dim))
        for i in range(n_layers - 2):
            layers.append(_init_gin_mlp(keys[i + 1], hidden_dim, hidden_dim,
                                        hidden_dim))
        layers.append(_init_gin_mlp(keys[n_layers - 1], hidden_dim, hidden_dim,
                                    embedding_dim))
    # TODO(synk): DecoderLinear definition is not provided in the source file;
    # assumed nn.Linear(embedding_dim, 1) applied per node.
    out = _init_linear(keys[n_layers], embedding_dim, 1)
    return {"layers": layers, "out": out}


# ------------------------------ Pure-JAX reference ---------------------------
# Canonical (un-folded, two-pass BN) path with bf16 matmul operands and f32
# accumulation, so it checks the decoder fold and one-pass BN rewrite.


def gin_forward_ref(params, x, edge_index, n_layers):
    n = x.shape[0]
    src, dst = edge_index[0], edge_index[1]
    diag = jnp.arange(n)
    a = (jnp.zeros((n, n), jnp.float32)
         .at[dst, src].add(1.0)
         .at[diag, diag].add(1.0 + GIN_EPS)).astype(jnp.bfloat16)
    inv_n = 1.0 / n
    h = x.astype(jnp.bfloat16)
    h_f32 = None
    for l, (w1, b1, g, bt, w2, b2) in enumerate(params["layers"]):
        agg = jnp.dot(a, h, preferred_element_type=jnp.float32)
        z = jnp.dot(agg.astype(jnp.bfloat16), w1.astype(jnp.bfloat16),
                    preferred_element_type=jnp.float32) + b1
        mean = jnp.sum(z, axis=0, keepdims=True) * inv_n
        c = z - mean
        var = jnp.sum(c * c, axis=0, keepdims=True) * inv_n
        z = c * jax.lax.rsqrt(var + BN_EPS) * g + bt
        z = jnp.maximum(z, 0.0)
        h_f32 = jnp.dot(z.astype(jnp.bfloat16), w2.astype(jnp.bfloat16),
                        preferred_element_type=jnp.float32) + b2
        if l < n_layers - 1:
            h_f32 = jnp.maximum(h_f32, 0.0)
        h = h_f32.astype(jnp.bfloat16)
    wd, bd = params["out"]
    out = jnp.dot(h, wd.astype(jnp.bfloat16),
                  preferred_element_type=jnp.float32) + bd
    return out, h_f32


# ----------------------------------- Main ------------------------------------

if __name__ == "__main__":
    num_features = 8
    hidden_dim = 32
    embedding_dim = 16
    output_dim = 1
    n_layers = 3
    num_nodes = 16
    num_edges = 40

    key = jax.random.PRNGKey(0)
    k_x, k_e, k_p = jax.random.split(key, 3)

    x = jax.random.normal(k_x, (num_nodes, num_features), jnp.float32)
    edge_index = jax.random.randint(k_e, (2, num_edges), 0, num_nodes,
                                    dtype=jnp.int32)
    params = init_gin_params(k_p, num_features, hidden_dim, embedding_dim,
                             n_layers)

    # One-time weight padding/stacking, hoisted out of the per-call path.
    packed, (_, _, emb, out_dim, _) = pack_gin_params(params)

    fwd = jax.jit(gin_forward, static_argnames=("n_layers", "emb", "out_dim"))
    out, h = fwd(packed, x, edge_index, n_layers=n_layers, emb=emb,
                 out_dim=out_dim)
    out = jax.block_until_ready(out)
    h = jax.block_until_ready(h)

    out_ref, h_ref = gin_forward_ref(params, x, edge_index, n_layers)
    assert out.shape == (num_nodes, output_dim)
    assert h.shape == (num_nodes, embedding_dim)
    # h: identical matmul operands; only the one-pass BN rewrite differs (f32).
    assert jnp.allclose(h, h_ref, atol=5e-3, rtol=5e-3), (
        float(jnp.max(jnp.abs(h - h_ref))))
    # out: decoder folded into W2 in bf16 -> slightly different rounding path.
    assert jnp.allclose(out, out_ref, atol=1e-2, rtol=1e-2), (
        float(jnp.max(jnp.abs(out - out_ref))))

    print("KERNEL_OK")
</pallas_src>

<mosaic_0001>
module attributes {stable_mosaic.version = 11 : i64} {
  func.func @gin_fused_kernel(%arg0: memref<16x16xbf16, #tpu.memory_space<vmem>>, %arg1: memref<16x128xbf16, #tpu.memory_space<vmem>>, %arg2: memref<16x1xf32, #tpu.memory_space<vmem>>, %arg3: memref<3x128x128xbf16, #tpu.memory_space<vmem>>, %arg4: memref<3x8x128xf32, #tpu.memory_space<vmem>>, %arg5: memref<3x128x128xbf16, #tpu.memory_space<vmem>>, %arg6: memref<16x128xf32, #tpu.memory_space<vmem>>) attributes {dimension_semantics = [], scalar_prefetch = 0 : i64, scratch_operands = 0 : i64, tpu.core_type = #tpu.core_type<tc>} {
    %c0 = arith.constant 0 : index
    %c0_0 = arith.constant 0 : index
    %0 = vector.load %arg0[%c0, %c0_0] : memref<16x16xbf16, #tpu.memory_space<vmem>>, vector<16x16xbf16>
    %c0_1 = arith.constant 0 : index
    %c0_2 = arith.constant 0 : index
    %1 = vector.load %arg2[%c0_1, %c0_2] : memref<16x1xf32, #tpu.memory_space<vmem>>, vector<16x1xf32>
    %c0_3 = arith.constant 0 : index
    %c0_4 = arith.constant 0 : index
    %2 = vector.load %arg1[%c0_3, %c0_4] : memref<16x128xbf16, #tpu.memory_space<vmem>>, vector<16x128xbf16>
    %c0_5 = arith.constant 0 : index
    %c0_6 = arith.constant 0 : index
    %c0_7 = arith.constant 0 : index
    %3 = vector.load %arg4[%c0_5, %c0_6, %c0_7] : memref<3x8x128xf32, #tpu.memory_space<vmem>>, vector<1x8x128xf32>
    %4 = vector.shape_cast %3 : vector<1x8x128xf32> to vector<8x128xf32>
    %cst = arith.constant dense<0.000000e+00> : vector<16x128xf32>
    %5 = tpu.matmul %0, %2, %cst {dimension_numbers = #tpu.dot_dimension_numbers<[1], [0], [0], [1], [0, 0, 1, 1], [], []>} : vector<16x16xbf16>, vector<16x128xbf16>, vector<16x128xf32> -> vector<16x128xf32>
    %6 = arith.truncf %5 : vector<16x128xf32> to vector<16x128xbf16>
    %c0_8 = arith.constant 0 : index
    %c0_9 = arith.constant 0 : index
    %c0_10 = arith.constant 0 : index
    %7 = vector.load %arg3[%c0_8, %c0_9, %c0_10] : memref<3x128x128xbf16, #tpu.memory_space<vmem>>, vector<1x128x128xbf16>
    %8 = vector.shape_cast %7 : vector<1x128x128xbf16> to vector<128x128xbf16>
    %cst_11 = arith.constant dense<0.000000e+00> : vector<16x128xf32>
    %9 = tpu.matmul %6, %8, %cst_11 {dimension_numbers = #tpu.dot_dimension_numbers<[1], [0], [0], [1], [0, 0, 1, 1], [], []>} : vector<16x128xbf16>, vector<128x128xbf16>, vector<16x128xf32> -> vector<16x128xf32>
    %10 = vector.extract_strided_slice %4 {offsets = [0, 0], sizes = [1, 128], strides = [1, 1]} : vector<8x128xf32> to vector<1x128xf32>
    %11 = vector.broadcast %10 : vector<1x128xf32> to vector<16x128xf32>
    %12 = arith.addf %9, %11 : vector<16x128xf32>
    %13 = vector.broadcast %1 : vector<16x1xf32> to vector<16x128xf32>
    %14 = arith.mulf %12, %13 : vector<16x128xf32>
    %cst_12 = arith.constant dense<0.000000e+00> : vector<128xf32>
    %15 = vector.multi_reduction <add>, %14, %cst_12 [0] : vector<16x128xf32> to vector<128xf32>
    %16 = vector.shape_cast %15 : vector<128xf32> to vector<1x128xf32>
    %cst_13 = arith.constant 6.250000e-02 : f32
    %17 = vector.broadcast %cst_13 : f32 to vector<1x128xf32>
    %18 = arith.mulf %16, %17 : vector<1x128xf32>
    %19 = arith.mulf %14, %14 : vector<16x128xf32>
    %cst_14 = arith.constant dense<0.000000e+00> : vector<128xf32>
    %20 = vector.multi_reduction <add>, %19, %cst_14 [0] : vector<16x128xf32> to vector<128xf32>
    %21 = vector.shape_cast %20 : vector<128xf32> to vector<1x128xf32>
    %cst_15 = arith.constant 6.250000e-02 : f32
    %22 = vector.broadcast %cst_15 : f32 to vector<1x128xf32>
    %23 = arith.mulf %21, %22 : vector<1x128xf32>
    %24 = arith.mulf %18, %18 : vector<1x128xf32>
    %25 = arith.subf %23, %24 : vector<1x128xf32>
    %26 = vector.extract_strided_slice %4 {offsets = [1, 0], sizes = [1, 128], strides = [1, 1]} : vector<8x128xf32> to vector<1x128xf32>
    %cst_16 = arith.constant 9.99999974E-6 : f32
    %27 = vector.broadcast %cst_16 : f32 to vector<1x128xf32>
    %28 = arith.addf %25, %27 : vector<1x128xf32>
    %29 = math.rsqrt %28 : vector<1x128xf32>
    %30 = arith.mulf %26, %29 : vector<1x128xf32>
    %31 = vector.extract_strided_slice %4 {offsets = [2, 0], sizes = [1, 128], strides = [1, 1]} : vector<8x128xf32> to vector<1x128xf32>
    %32 = arith.mulf %18, %30 : vector<1x128xf32>
    %33 = arith.subf %31, %32 : vector<1x128xf32>
    %34 = vector.broadcast %30 : vector<1x128xf32> to vector<16x128xf32>
    %35 = arith.mulf %14, %34 : vector<16x128xf32>
    %36 = vector.broadcast %33 : vector<1x128xf32> to vector<16x128xf32>
    %37 = arith.addf %35, %36 : vector<16x128xf32>
    %cst_17 = arith.constant 0.000000e+00 : f32
    %38 = vector.broadcast %cst_17 : f32 to vector<16x128xf32>
    %39 = arith.maximumf %37, %38 : vector<16x128xf32>
    %40 = arith.truncf %39 : vector<16x128xf32> to vector<16x128xbf16>
    %c0_18 = arith.constant 0 : index
    %c0_19 = arith.constant 0 : index
    %c0_20 = arith.constant 0 : index
    %41 = vector.load %arg5[%c0_18, %c0_19, %c0_20] : memref<3x128x128xbf16, #tpu.memory_space<vmem>>, vector<1x128x128xbf16>
    %42 = vector.shape_cast %41 : vector<1x128x128xbf16> to vector<128x128xbf16>
    %cst_21 = arith.constant dense<0.000000e+00> : vector<16x128xf32>
    %43 = tpu.matmul %40, %42, %cst_21 {dimension_numbers = #tpu.dot_dimension_numbers<[1], [0], [0], [1], [0, 0, 1, 1], [], []>} : vector<16x128xbf16>, vector<128x128xbf16>, vector<16x128xf32> -> vector<16x128xf32>
    %44 = vector.extract_strided_slice %4 {offsets = [3, 0], sizes = [1, 128], strides = [1, 1]} : vector<8x128xf32> to vector<1x128xf32>
    %45 = vector.broadcast %44 : vector<1x128xf32> to vector<16x128xf32>
    %46 = arith.addf %43, %45 : vector<16x128xf32>
    %cst_22 = arith.constant 0.000000e+00 : f32
    %47 = vector.broadcast %cst_22 : f32 to vector<16x128xf32>
    %48 = arith.maximumf %46, %47 : vector<16x128xf32>
    %49 = arith.truncf %48 : vector<16x128xf32> to vector<16x128xbf16>
    %c1 = arith.constant 1 : index
    %c0_23 = arith.constant 0 : index
    %c0_24 = arith.constant 0 : index
    %50 = vector.load %arg4[%c1, %c0_23, %c0_24] : memref<3x8x128xf32, #tpu.memory_space<vmem>>, vector<1x8x128xf32>
    %51 = vector.shape_cast %50 : vector<1x8x128xf32> to vector<8x128xf32>
    %cst_25 = arith.constant dense<0.000000e+00> : vector<16x128xf32>
    %52 = tpu.matmul %0, %49, %cst_25 {dimension_numbers = #tpu.dot_dimension_numbers<[1], [0], [0], [1], [0, 0, 1, 1], [], []>} : vector<16x16xbf16>, vector<16x128xbf16>, vector<16x128xf32> -> vector<16x128xf32>
    %53 = arith.truncf %52 : vector<16x128xf32> to vector<16x128xbf16>
    %c1_26 = arith.constant 1 : index
    %c0_27 = arith.constant 0 : index
    %c0_28 = arith.constant 0 : index
    %54 = vector.load %arg3[%c1_26, %c0_27, %c0_28] : memref<3x128x128xbf16, #tpu.memory_space<vmem>>, vector<1x128x128xbf16>
    %55 = vector.shape_cast %54 : vector<1x128x128xbf16> to vector<128x128xbf16>
    %cst_29 = arith.constant dense<0.000000e+00> : vector<16x128xf32>
    %56 = tpu.matmul %53, %55, %cst_29 {dimension_numbers = #tpu.dot_dimension_numbers<[1], [0], [0], [1], [0, 0, 1, 1], [], []>} : vector<16x128xbf16>, vector<128x128xbf16>, vector<16x128xf32> -> vector<16x128xf32>
    %57 = vector.extract_strided_slice %51 {offsets = [0, 0], sizes = [1, 128], strides = [1, 1]} : vector<8x128xf32> to vector<1x128xf32>
    %58 = vector.broadcast %57 : vector<1x128xf32> to vector<16x128xf32>
    %59 = arith.addf %56, %58 : vector<16x128xf32>
    %60 = vector.broadcast %1 : vector<16x1xf32> to vector<16x128xf32>
    %61 = arith.mulf %59, %60 : vector<16x128xf32>
    %cst_30 = arith.constant dense<0.000000e+00> : vector<128xf32>
    %62 = vector.multi_reduction <add>, %61, %cst_30 [0] : vector<16x128xf32> to vector<128xf32>
    %63 = vector.shape_cast %62 : vector<128xf32> to vector<1x128xf32>
    %cst_31 = arith.constant 6.250000e-02 : f32
    %64 = vector.broadcast %cst_31 : f32 to vector<1x128xf32>
    %65 = arith.mulf %63, %64 : vector<1x128xf32>
    %66 = arith.mulf %61, %61 : vector<16x128xf32>
    %cst_32 = arith.constant dense<0.000000e+00> : vector<128xf32>
    %67 = vector.multi_reduction <add>, %66, %cst_32 [0] : vector<16x128xf32> to vector<128xf32>
    %68 = vector.shape_cast %67 : vector<128xf32> to vector<1x128xf32>
    %cst_33 = arith.constant 6.250000e-02 : f32
    %69 = vector.broadcast %cst_33 : f32 to vector<1x128xf32>
    %70 = arith.mulf %68, %69 : vector<1x128xf32>
    %71 = arith.mulf %65, %65 : vector<1x128xf32>
    %72 = arith.subf %70, %71 : vector<1x128xf32>
    %73 = vector.extract_strided_slice %51 {offsets = [1, 0], sizes = [1, 128], strides = [1, 1]} : vector<8x128xf32> to vector<1x128xf32>
    %cst_34 = arith.constant 9.99999974E-6 : f32
    %74 = vector.broadcast %cst_34 : f32 to vector<1x128xf32>
    %75 = arith.addf %72, %74 : vector<1x128xf32>
    %76 = math.rsqrt %75 : vector<1x128xf32>
    %77 = arith.mulf %73, %76 : vector<1x128xf32>
    %78 = vector.extract_strided_slice %51 {offsets = [2, 0], sizes = [1, 128], strides = [1, 1]} : vector<8x128xf32> to vector<1x128xf32>
    %79 = arith.mulf %65, %77 : vector<1x128xf32>
    %80 = arith.subf %78, %79 : vector<1x128xf32>
    %81 = vector.broadcast %77 : vector<1x128xf32> to vector<16x128xf32>
    %82 = arith.mulf %61, %81 : vector<16x128xf32>
    %83 = vector.broadcast %80 : vector<1x128xf32> to vector<16x128xf32>
    %84 = arith.addf %82, %83 : vector<16x128xf32>
    %cst_35 = arith.constant 0.000000e+00 : f32
    %85 = vector.broadcast %cst_35 : f32 to vector<16x128xf32>
    %86 = arith.maximumf %84, %85 : vector<16x128xf32>
    %87 = arith.truncf %86 : vector<16x128xf32> to vector<16x128xbf16>
    %c1_36 = arith.constant 1 : index
    %c0_37 = arith.constant 0 : index
    %c0_38 = arith.constant 0 : index
    %88 = vector.load %arg5[%c1_36, %c0_37, %c0_38] : memref<3x128x128xbf16, #tpu.memory_space<vmem>>, vector<1x128x128xbf16>
    %89 = vector.shape_cast %88 : vector<1x128x128xbf16> to vector<128x128xbf16>
    %cst_39 = arith.constant dense<0.000000e+00> : vector<16x128xf32>
    %90 = tpu.matmul %87, %89, %cst_39 {dimension_numbers = #tpu.dot_dimension_numbers<[1], [0], [0], [1], [0, 0, 1, 1], [], []>} : vector<16x128xbf16>, vector<128x128xbf16>, vector<16x128xf32> -> vector<16x128xf32>
    %91 = vector.extract_strided_slice %51 {offsets = [3, 0], sizes = [1, 128], strides = [1, 1]} : vector<8x128xf32> to vector<1x128xf32>
    %92 = vector.broadcast %91 : vector<1x128xf32> to vector<16x128xf32>
    %93 = arith.addf %90, %92 : vector<16x128xf32>
    %cst_40 = arith.constant 0.000000e+00 : f32
    %94 = vector.broadcast %cst_40 : f32 to vector<16x128xf32>
    %95 = arith.maximumf %93, %94 : vector<16x128xf32>
    %96 = arith.truncf %95 : vector<16x128xf32> to vector<16x128xbf16>
    %c2 = arith.constant 2 : index
    %c0_41 = arith.constant 0 : index
    %c0_42 = arith.constant 0 : index
    %97 = vector.load %arg4[%c2, %c0_41, %c0_42] : memref<3x8x128xf32, #tpu.memory_space<vmem>>, vector<1x8x128xf32>
    %98 = vector.shape_cast %97 : vector<1x8x128xf32> to vector<8x128xf32>
    %cst_43 = arith.constant dense<0.000000e+00> : vector<16x128xf32>
    %99 = tpu.matmul %0, %96, %cst_43 {dimension_numbers = #tpu.dot_dimension_numbers<[1], [0], [0], [1], [0, 0, 1, 1], [], []>} : vector<16x16xbf16>, vector<16x128xbf16>, vector<16x128xf32> -> vector<16x128xf32>
    %100 = arith.truncf %99 : vector<16x128xf32> to vector<16x128xbf16>
    %c2_44 = arith.constant 2 : index
    %c0_45 = arith.constant 0 : index
    %c0_46 = arith.constant 0 : index
    %101 = vector.load %arg3[%c2_44, %c0_45, %c0_46] : memref<3x128x128xbf16, #tpu.memory_space<vmem>>, vector<1x128x128xbf16>
    %102 = vector.shape_cast %101 : vector<1x128x128xbf16> to vector<128x128xbf16>
    %cst_47 = arith.constant dense<0.000000e+00> : vector<16x128xf32>
    %103 = tpu.matmul %100, %102, %cst_47 {dimension_numbers = #tpu.dot_dimension_numbers<[1], [0], [0], [1], [0, 0, 1, 1], [], []>} : vector<16x128xbf16>, vector<128x128xbf16>, vector<16x128xf32> -> vector<16x128xf32>
    %104 = vector.extract_strided_slice %98 {offsets = [0, 0], sizes = [1, 128], strides = [1, 1]} : vector<8x128xf32> to vector<1x128xf32>
    %105 = vector.broadcast %104 : vector<1x128xf32> to vector<16x128xf32>
    %106 = arith.addf %103, %105 : vector<16x128xf32>
    %107 = vector.broadcast %1 : vector<16x1xf32> to vector<16x128xf32>
    %108 = arith.mulf %106, %107 : vector<16x128xf32>
    %cst_48 = arith.constant dense<0.000000e+00> : vector<128xf32>
    %109 = vector.multi_reduction <add>, %108, %cst_48 [0] : vector<16x128xf32> to vector<128xf32>
    %110 = vector.shape_cast %109 : vector<128xf32> to vector<1x128xf32>
    %cst_49 = arith.constant 6.250000e-02 : f32
    %111 = vector.broadcast %cst_49 : f32 to vector<1x128xf32>
    %112 = arith.mulf %110, %111 : vector<1x128xf32>
    %113 = arith.mulf %108, %108 : vector<16x128xf32>
    %cst_50 = arith.constant dense<0.000000e+00> : vector<128xf32>
    %114 = vector.multi_reduction <add>, %113, %cst_50 [0] : vector<16x128xf32> to vector<128xf32>
    %115 = vector.shape_cast %114 : vector<128xf32> to vector<1x128xf32>
    %cst_51 = arith.constant 6.250000e-02 : f32
    %116 = vector.broadcast %cst_51 : f32 to vector<1x128xf32>
    %117 = arith.mulf %115, %116 : vector<1x128xf32>
    %118 = arith.mulf %112, %112 : vector<1x128xf32>
    %119 = arith.subf %117, %118 : vector<1x128xf32>
    %120 = vector.extract_strided_slice %98 {offsets = [1, 0], sizes = [1, 128], strides = [1, 1]} : vector<8x128xf32> to vector<1x128xf32>
    %cst_52 = arith.constant 9.99999974E-6 : f32
    %121 = vector.broadcast %cst_52 : f32 to vector<1x128xf32>
    %122 = arith.addf %119, %121 : vector<1x128xf32>
    %123 = math.rsqrt %122 : vector<1x128xf32>
    %124 = arith.mulf %120, %123 : vector<1x128xf32>
    %125 = vector.extract_strided_slice %98 {offsets = [2, 0], sizes = [1, 128], strides = [1, 1]} : vector<8x128xf32> to vector<1x128xf32>
    %126 = arith.mulf %112, %124 : vector<1x128xf32>
    %127 = arith.subf %125, %126 : vector<1x128xf32>
    %128 = vector.broadcast %124 : vector<1x128xf32> to vector<16x128xf32>
    %129 = arith.mulf %108, %128 : vector<16x128xf32>
    %130 = vector.broadcast %127 : vector<1x128xf32> to vector<16x128xf32>
    %131 = arith.addf %129, %130 : vector<16x128xf32>
    %cst_53 = arith.constant 0.000000e+00 : f32
    %132 = vector.broadcast %cst_53 : f32 to vector<16x128xf32>
    %133 = arith.maximumf %131, %132 : vector<16x128xf32>
    %134 = arith.truncf %133 : vector<16x128xf32> to vector<16x128xbf16>
    %c2_54 = arith.constant 2 : index
    %c0_55 = arith.constant 0 : index
    %c0_56 = arith.constant 0 : index
    %135 = vector.load %arg5[%c2_54, %c0_55, %c0_56] : memref<3x128x128xbf16, #tpu.memory_space<vmem>>, vector<1x128x128xbf16>
    %136 = vector.shape_cast %135 : vector<1x128x128xbf16> to vector<128x128xbf16>
    %cst_57 = arith.constant dense<0.000000e+00> : vector<16x128xf32>
    %137 = tpu.matmul %134, %136, %cst_57 {dimension_numbers = #tpu.dot_dimension_numbers<[1], [0], [0], [1], [0, 0, 1, 1], [], []>} : vector<16x128xbf16>, vector<128x128xbf16>, vector<16x128xf32> -> vector<16x128xf32>
    %138 = vector.extract_strided_slice %98 {offsets = [3, 0], sizes = [1, 128], strides = [1, 1]} : vector<8x128xf32> to vector<1x128xf32>
    %139 = vector.broadcast %138 : vector<1x128xf32> to vector<16x128xf32>
    %140 = arith.addf %137, %139 : vector<16x128xf32>
    %c0_58 = arith.constant 0 : index
    %c0_59 = arith.constant 0 : index
    %141 = vector.load %arg6[%c0_58, %c0_59] : memref<16x128xf32, #tpu.memory_space<vmem>>, vector<16x128xf32>
    tpu.vector_store %arg6[%c0_58, %c0_59], %140 {strides = array<i32>} : memref<16x128xf32, #tpu.memory_space<vmem>>, vector<16x128xf32>,
    return
  }
}

</mosaic_0001>

<llo_original>
// kernel: gin_forward.1
$region0: #{gin_forward.1}
  #allocation0 [shape = 'u32[]', space=smem, size = 0x4, offset = 0x4, fixed_abs, tag = 'smem constant byte address 0x4 - core index']
  #allocation1 [shape = 'u32[72,128]{1,0:T(1,128)}', space=vmem, size = 0x9000, scoped, tag = 'internal scratch']
  %s0 = inlined_call_operand.vmem [shape: bf16[16,16], index: 0, kind: input, shape index: {}]
  %s1 = inlined_call_operand.vmem [shape: bf16[16,128], index: 1, kind: input, shape index: {}]
  %s2 = inlined_call_operand.vmem [shape: f32[16,1], index: 2, kind: input, shape index: {}]
  %s3 = inlined_call_operand.vmem [shape: bf16[3,128,128], index: 3, kind: input, shape index: {}]
  %s4 = inlined_call_operand.vmem [shape: f32[3,8,128], index: 4, kind: input, shape index: {}]
  %s5 = inlined_call_operand.vmem [shape: bf16[3,128,128], index: 5, kind: input, shape index: {}]
  %s6 = inlined_call_operand.vmem [shape: f32[16,128], index: 6, kind: output, shape index: {}]
  %s7 = sld [smem:[#allocation0]]
  $region34: #{gin_forward.1} parent=0
    _
  %s9 = ssub.s32 1, %s7
  %s10 = scalar_select 0, %s9, %s7
  // Predicated region
  $region2: #{gin_forward.1} parent=0 // pred_check
    _
  $region3: #{gin_forward.1} parent=0 // pred_check_branch
    %12 = sbr.rel (0) target = $region5
  $region4: #{gin_forward.1} parent=0 // pred_region
    _
  $region5: #{gin_forward.1} parent=0 // pred_fallthru
    _
  // Predicated region
  $region6: #{gin_forward.1} parent=0 // pred_check
    _
  $region7: #{gin_forward.1} parent=0 // pred_check_branch
    %14 = sbr.rel (0) target = $region9
  $region8: #{gin_forward.1} parent=0 // pred_region
    _
  $region9: #{gin_forward.1} parent=0 // pred_fallthru
    _
  // Predicated region
  $region10: #{gin_forward.1} parent=0 // pred_check
    _
  $region11: #{gin_forward.1} parent=0 // pred_check_branch
    %16 = sbr.rel (0) target = $region13
  $region12: #{gin_forward.1} parent=0 // pred_region
    _
  $region13: #{gin_forward.1} parent=0 // pred_fallthru
    _
  // Predicated region
  $region14: #{gin_forward.1} parent=0 // pred_check
    _
  $region15: #{gin_forward.1} parent=0 // pred_check_branch
    %18 = sbr.rel (0) target = $region17
  $region16: #{gin_forward.1} parent=0 // pred_region
    _
  $region17: #{gin_forward.1} parent=0 // pred_fallthru
    _
  // Predicated region
  $region18: #{gin_forward.1} parent=0 // pred_check
    _
  $region19: #{gin_forward.1} parent=0 // pred_check_branch
    %20 = sbr.rel (0) target = $region21
  $region20: #{gin_forward.1} parent=0 // pred_region
    _
  $region21: #{gin_forward.1} parent=0 // pred_fallthru
    _
  // Predicated region
  $region22: #{gin_forward.1} parent=0 // pred_check
    _
  $region23: #{gin_forward.1} parent=0 // pred_check_branch
    %22 = sbr.rel (0) target = $region25
  $region24: #{gin_forward.1} parent=0 // pred_region
    _
  $region25: #{gin_forward.1} parent=0 // pred_fallthru
    _
  %v24 = vld [vmem:[%s0] sm:$0xf]
  %v25 = vld [vmem:[%s0 + $0x4] sm:$0xf]
  %v26 = vld [vmem:[%s2] sm:$0xff]
  %v27 = vld [vmem:[%s2 + $0x8] sm:$0xff]
  %v28 = vld [vmem:[%s1] sm:$0xf]
  %v29 = vld [vmem:[%s1 + $0x4] sm:$0xf]
  %v30 = vld [vmem:[%s4] sm:$0xff]
  %v33 = vunpack.c.l.b16 %v24
  %v34 = vunpack.c.l.b16 %v25
  %v35 = vpack.c.b16 %v34, %v33
  %v38 = vunpack.c.l.b16 %v28
  %v39 = vunpack.c.l.b16 %v29
  %v40 = vpack.c.b16 %v39, %v38
  %vm42 = vcmask 130048
  %v44 = vsel %vm42, %v35, 0
  %46 = vmatpush.bf16.msra.mxu0 0
  %47 = vmatpush.bf16.msra.mxu0 0
  %48 = vmatpush.bf16.msra.mxu0 0
  %49 = vmatpush.bf16.msra.mxu0 0
  %50 = vmatpush.bf16.msra.mxu0 0
  %51 = vmatpush.bf16.msra.mxu0 0
  %52 = vmatpush.bf16.msra.mxu0 0
  %53 = vmatpush.bf16.msra.mxu0 %v40
  %54 = vmatmul.bf16.gmra.mxu0 %v44
  %v55 = vpop.f32.mrf.mxu0
  %v56 = vadd.f32 0.0, %v55
  %v57 = vpop.f32.mrf.mxu0
  %v58 = vadd.f32 0.0, %v57
  %59 = vdwg.mxu0
  %v60 = vpack.c.bf16 %v58, %v56
  %v61 = vld [vmem:[%s3] sm:$0xf]
  %v62 = vld [vmem:[%s3 + $0x4] sm:$0xf]
  %v63 = vld [vmem:[%s3 + $0x8] sm:$0xf]
  %v64 = vld [vmem:[%s3 + $0xc] sm:$0xf]
  %v65 = vld [vmem:[%s3 + $0x10] sm:$0xf]
  %v66 = vld [vmem:[%s3 + $0x14] sm:$0xf]
  %v67 = vld [vmem:[%s3 + $0x18] sm:$0xf]
  %v68 = vld [vmem:[%s3 + $0x1c] sm:$0xf]
  %v69 = vld [vmem:[%s3 + $0x20] sm:$0xf]
  %v70 = vld [vmem:[%s3 + $0x24] sm:$0xf]
  %v71 = vld [vmem:[%s3 + $0x28] sm:$0xf]
  %v72 = vld [vmem:[%s3 + $0x2c] sm:$0xf]
  %v73 = vld [vmem:[%s3 + $0x30] sm:$0xf]
  %v74 = vld [vmem:[%s3 + $0x34] sm:$0xf]
  %v75 = vld [vmem:[%s3 + $0x38] sm:$0xf]
  %v76 = vld [vmem:[%s3 + $0x3c] sm:$0xf]
  %v77 = vperm.slane %v30, 0
  %v94 = vunpack.c.l.b16 %v61
  %v95 = vunpack.c.l.b16 %v62
  %v96 = vunpack.c.l.b16 %v63
  %v97 = vunpack.c.l.b16 %v64
  %v98 = vunpack.c.l.b16 %v65
  %v99 = vunpack.c.l.b16 %v66
  %v100 = vunpack.c.l.b16 %v67
  %v101 = vunpack.c.l.b16 %v68
  %v102 = vunpack.c.l.b16 %v69
  %v103 = vunpack.c.l.b16 %v70
  %v104 = vunpack.c.l.b16 %v71
  %v105 = vunpack.c.l.b16 %v72
  %v106 = vunpack.c.l.b16 %v73
  %v107 = vunpack.c.l.b16 %v74
  %v108 = vunpack.c.l.b16 %v75
  %v109 = vunpack.c.l.b16 %v76
  %v110 = vpack.c.b16 %v95, %v94
  %v111 = vpack.c.b16 %v97, %v96
  %v112 = vpack.c.b16 %v99, %v98
  %v113 = vpack.c.b16 %v101, %v100
  %v114 = vpack.c.b16 %v103, %v102
  %v115 = vpack.c.b16 %v105, %v104
  %v116 = vpack.c.b16 %v107, %v106
  %v117 = vpack.c.b16 %v109, %v108
  %126 = vmatpush.bf16.msra.mxu0 %v117
  %127 = vmatpush.bf16.msra.mxu0 %v116
  %128 = vmatpush.bf16.msra.mxu0 %v115
  %129 = vmatpush.bf16.msra.mxu0 %v114
  %130 = vmatpush.bf16.msra.mxu0 %v113
  %131 = vmatpush.bf16.msra.mxu0 %v112
  %132 = vmatpush.bf16.msra.mxu0 %v111
  %133 = vmatpush.bf16.msra.mxu0 %v110
  %134 = vmatmul.bf16.gmra.mxu0 %v60
  %v135 = vpop.f32.mrf.mxu0
  %v136 = vadd.f32 %v77, %v135
  %v137 = vpop.f32.mrf.mxu0
  %v138 = vadd.f32 %v77, %v137
  %139 = vdwg.mxu0
  %141 = vset.pattern.permute.xlu0 0
  %142 = vperm.xlu0 %141, %v26
  %v143 = vpop.permute.xlu0 %142
  %146 = vset.pattern.permute.xlu0 0
  %147 = vperm.xlu0 %146, %v27
  %v148 = vpop.permute.xlu0 %147
  %v150 = vmul.f32 %v136, %v143
  %v151 = vmul.f32 %v138, %v148
  %v152 = vadd.f32 %v150, %v151
  %v153 = vrot.slane %v152, 4
  %v154 = vadd.f32 %v152, %v153
  %v155 = vrot.slane %v154, 2
  %v156 = vadd.f32 %v154, %v155
  %v157 = vrot.slane %v156, 1
  %v158 = vadd.f32 %v156, %v157
  %v159 = vmul.f32 %v158, 0.0625
  %v160 = vmul.f32 %v150, %v150
  %v161 = vmul.f32 %v151, %v151
  %v162 = vadd.f32 %v160, %v161
  %v163 = vrot.slane %v162, 4
  %v164 = vadd.f32 %v162, %v163
  %v165 = vrot.slane %v164, 2
  %v166 = vadd.f32 %v164, %v165
  %v167 = vrot.slane %v166, 1
  %v168 = vadd.f32 %v166, %v167
  %v169 = vmul.f32 %v168, 0.0625
  %v170 = vmul.f32 %v159, %v159
  %v171 = vsub.f32 %v169, %v170
  %v172 = vadd.f32 %v171, 1e-05
  %v173 = vrsqrt.pop %v172
  %v174 = vmul.f32 %v173, %v172
  %v175 = vmul.f32 %v174, %v173
  %v176 = vmul.f32 0.5, %v175
  %v177 = vsub.f32 1.5, %v176
  %v178 = vmul.f32 %v173, %v177
  %vm179 = vweird.f32 %v172
  %vm180 = vweird.f32 %v173
  %vm181 = vmor %vm179, %vm180
  %v182 = vsel %vm181, %v173, %v178
  %v183 = vmul.f32 %v30, %v182
  %v184 = vmul.f32 %v159, %v183
  %v186 = vrot.slane %v184, 7
  %v188 = vsub.f32 %v30, %v186
  %v189 = vperm.slane %v183, 1
  %v190 = vmul.f32 %v150, %v189
  %v191 = vmul.f32 %v151, %v189
  %v192 = vperm.slane %v188, 2
  %v193 = vadd.f32 %v190, %v192
  %v194 = vadd.f32 %v191, %v192
  %v195 = vmax.f32 %v193, 0.0
  %v196 = vmax.f32 %v194, 0.0
  %v197 = vpack.c.bf16 %v196, %v195
  %v198 = vld [vmem:[%s5] sm:$0xf]
  %v199 = vld [vmem:[%s5 + $0x4] sm:$0xf]
  %v200 = vld [vmem:[%s5 + $0x8] sm:$0xf]
  %v201 = vld [vmem:[%s5 + $0xc] sm:$0xf]
  %v202 = vld [vmem:[%s5 + $0x10] sm:$0xf]
  %v203 = vld [vmem:[%s5 + $0x14] sm:$0xf]
  %v204 = vld [vmem:[%s5 + $0x18] sm:$0xf]
  %v205 = vld [vmem:[%s5 + $0x1c] sm:$0xf]
  %v206 = vld [vmem:[%s5 + $0x20] sm:$0xf]
  %v207 = vld [vmem:[%s5 + $0x24] sm:$0xf]
  %v208 = vld [vmem:[%s5 + $0x28] sm:$0xf]
  %v209 = vld [vmem:[%s5 + $0x2c] sm:$0xf]
  %v210 = vld [vmem:[%s5 + $0x30] sm:$0xf]
  %v211 = vld [vmem:[%s5 + $0x34] sm:$0xf]
  %v212 = vld [vmem:[%s5 + $0x38] sm:$0xf]
  %v213 = vld [vmem:[%s5 + $0x3c] sm:$0xf]
  %v214 = vperm.slane %v30, 3
  %v231 = vunpack.c.l.b16 %v198
  %v232 = vunpack.c.l.b16 %v199
  %v233 = vunpack.c.l.b16 %v200
  %v234 = vunpack.c.l.b16 %v201
  %v235 = vunpack.c.l.b16 %v202
  %v236 = vunpack.c.l.b16 %v203
  %v237 = vunpack.c.l.b16 %v204
  %v238 = vunpack.c.l.b16 %v205
  %v239 = vunpack.c.l.b16 %v206
  %v240 = vunpack.c.l.b16 %v207
  %v241 = vunpack.c.l.b16 %v208
  %v242 = vunpack.c.l.b16 %v209
  %v243 = vunpack.c.l.b16 %v210
  %v244 = vunpack.c.l.b16 %v211
  %v245 = vunpack.c.l.b16 %v212
  %v246 = vunpack.c.l.b16 %v213
  %v247 = vpack.c.b16 %v232, %v231
  %v248 = vpack.c.b16 %v234, %v233
  %v249 = vpack.c.b16 %v236, %v235
  %v250 = vpack.c.b16 %v238, %v237
  %v251 = vpack.c.b16 %v240, %v239
  %v252 = vpack.c.b16 %v242, %v241
  %v253 = vpack.c.b16 %v244, %v243
  %v254 = vpack.c.b16 %v246, %v245
  %263 = vmatpush.bf16.msra.mxu0 %v254
  %264 = vmatpush.bf16.msra.mxu0 %v253
  %265 = vmatpush.bf16.msra.mxu0 %v252
  %266 = vmatpush.bf16.msra.mxu0 %v251
  %267 = vmatpush.bf16.msra.mxu0 %v250
  %268 = vmatpush.bf16.msra.mxu0 %v249
  %269 = vmatpush.bf16.msra.mxu0 %v248
  %270 = vmatpush.bf16.msra.mxu0 %v247
  %271 = vmatmul.bf16.gmra.mxu0 %v197
  %v272 = vpop.f32.mrf.mxu0
  %v273 = vadd.f32 %v214, %v272
  %v274 = vpop.f32.mrf.mxu0
  %v275 = vadd.f32 %v214, %v274
  %276 = vdwg.mxu0
  %v277 = vmax.f32 %v273, 0.0
  %v278 = vmax.f32 %v275, 0.0
  %v279 = vpack.c.bf16 %v278, %v277
  %s280 = scalar_lea.vmem %s4, 8
  %v281 = vld [vmem:[%s280] sm:$0xff]
  %282 = vmatpush.bf16.msra.mxu0 0
  %283 = vmatpush.bf16.msra.mxu0 0
  %284 = vmatpush.bf16.msra.mxu0 0
  %285 = vmatpush.bf16.msra.mxu0 0
  %286 = vmatpush.bf16.msra.mxu0 0
  %287 = vmatpush.bf16.msra.mxu0 0
  %288 = vmatpush.bf16.msra.mxu0 0
  %289 = vmatpush.bf16.msra.mxu0 %v279
  %290 = vmatmul.bf16.gmra.mxu0 %v44
  %v291 = vpop.f32.mrf.mxu0
  %v292 = vadd.f32 0.0, %v291
  %v293 = vpop.f32.mrf.mxu0
  %v294 = vadd.f32 0.0, %v293
  %295 = vdwg.mxu0
  %v296 = vpack.c.bf16 %v294, %v292
  %s297 = scalar_lea.vmem %s3, 64
  %v298 = vld [vmem:[%s297] sm:$0xf]
  %v299 = vld [vmem:[%s297 + $0x4] sm:$0xf]
  %v300 = vld [vmem:[%s297 + $0x8] sm:$0xf]
  %v301 = vld [vmem:[%s297 + $0xc] sm:$0xf]
  %v302 = vld [vmem:[%s297 + $0x10] sm:$0xf]
  %v303 = vld [vmem:[%s297 + $0x14] sm:$0xf]
  %v304 = vld [vmem:[%s297 + $0x18] sm:$0xf]
  %v305 = vld [vmem:[%s297 + $0x1c] sm:$0xf]
  %v306 = vld [vmem:[%s297 + $0x20] sm:$0xf]
  %v307 = vld [vmem:[%s297 + $0x24] sm:$0xf]
  %v308 = vld [vmem:[%s297 + $0x28] sm:$0xf]
  %v309 = vld [vmem:[%s297 + $0x2c] sm:$0xf]
  %v310 = vld [vmem:[%s297 + $0x30] sm:$0xf]
  %v311 = vld [vmem:[%s297 + $0x34] sm:$0xf]
  %v312 = vld [vmem:[%s297 + $0x38] sm:$0xf]
  %v313 = vld [vmem:[%s297 + $0x3c] sm:$0xf]
  %v314 = vperm.slane %v281, 0
  %v331 = vunpack.c.l.b16 %v298
  %v332 = vunpack.c.l.b16 %v299
  %v333 = vunpack.c.l.b16 %v300
  %v334 = vunpack.c.l.b16 %v301
  %v335 = vunpack.c.l.b16 %v302
  %v336 = vunpack.c.l.b16 %v303
  %v337 = vunpack.c.l.b16 %v304
  %v338 = vunpack.c.l.b16 %v305
  %v339 = vunpack.c.l.b16 %v306
  %v340 = vunpack.c.l.b16 %v307
  %v341 = vunpack.c.l.b16 %v308
  %v342 = vunpack.c.l.b16 %v309
  %v343 = vunpack.c.l.b16 %v310
  %v344 = vunpack.c.l.b16 %v311
  %v345 = vunpack.c.l.b16 %v312
  %v346 = vunpack.c.l.b16 %v313
  %v347 = vpack.c.b16 %v332, %v331
  %v348 = vpack.c.b16 %v334, %v333
  %v349 = vpack.c.b16 %v336, %v335
  %v350 = vpack.c.b16 %v338, %v337
  %v351 = vpack.c.b16 %v340, %v339
  %v352 = vpack.c.b16 %v342, %v341
  %v353 = vpack.c.b16 %v344, %v343
  %v354 = vpack.c.b16 %v346, %v345
  %363 = vmatpush.bf16.msra.mxu0 %v354
  %364 = vmatpush.bf16.msra.mxu0 %v353
  %365 = vmatpush.bf16.msra.mxu0 %v352
  %366 = vmatpush.bf16.msra.mxu0 %v351
  %367 = vmatpush.bf16.msra.mxu0 %v350
  %368 = vmatpush.bf16.msra.mxu0 %v349
  %369 = vmatpush.bf16.msra.mxu0 %v348
  %370 = vmatpush.bf16.msra.mxu0 %v347
  %371 = vmatmul.bf16.gmra.mxu0 %v296
  %v372 = vpop.f32.mrf.mxu0
  %v373 = vadd.f32 %v314, %v372
  %v374 = vpop.f32.mrf.mxu0
  %v375 = vadd.f32 %v314, %v374
  %376 = vdwg.mxu0
  %v377 = vmul.f32 %v373, %v143
  %v378 = vmul.f32 %v375, %v148
  %v379 = vadd.f32 %v377, %v378
  %v380 = vrot.slane %v379, 4
  %v381 = vadd.f32 %v379, %v380
  %v382 = vrot.slane %v381, 2
  %v383 = vadd.f32 %v381, %v382
  %v384 = vrot.slane %v383, 1
  %v385 = vadd.f32 %v383, %v384
  %v386 = vmul.f32 %v385, 0.0625
  %v387 = vmul.f32 %v377, %v377
  %v388 = vmul.f32 %v378, %v378
  %v389 = vadd.f32 %v387, %v388
  %v390 = vrot.slane %v389, 4
  %v391 = vadd.f32 %v389, %v390
  %v392 = vrot.slane %v391, 2
  %v393 = vadd.f32 %v391, %v392
  %v394 = vrot.slane %v393, 1
  %v395 = vadd.f32 %v393, %v394
  %v396 = vmul.f32 %v395, 0.0625
  %v397 = vmul.f32 %v386, %v386
  %v398 = vsub.f32 %v396, %v397
  %v399 = vadd.f32 %v398, 1e-05
  %v400 = vrsqrt.pop %v399
  %v401 = vmul.f32 %v400, %v399
  %v402 = vmul.f32 %v401, %v400
  %v403 = vmul.f32 0.5, %v402
  %v404 = vsub.f32 1.5, %v403
  %v405 = vmul.f32 %v400, %v404
  %vm406 = vweird.f32 %v399
  %vm407 = vweird.f32 %v400
  %vm408 = vmor %vm406, %vm407
  %v409 = vsel %vm408, %v400, %v405
  %v410 = vmul.f32 %v281, %v409
  %v411 = vmul.f32 %v386, %v410
  %v413 = vrot.slane %v411, 7
  %v415 = vsub.f32 %v281, %v413
  %v416 = vperm.slane %v410, 1
  %v417 = vmul.f32 %v377, %v416
  %v418 = vmul.f32 %v378, %v416
  %v419 = vperm.slane %v415, 2
  %v420 = vadd.f32 %v417, %v419
  %v421 = vadd.f32 %v418, %v419
  %v422 = vmax.f32 %v420, 0.0
  %v423 = vmax.f32 %v421, 0.0
  %v424 = vpack.c.bf16 %v423, %v422
  %s425 = scalar_lea.vmem %s5, 64
  %v426 = vld [vmem:[%s425] sm:$0xf]
  %v427 = vld [vmem:[%s425 + $0x4] sm:$0xf]
  %v428 = vld [vmem:[%s425 + $0x8] sm:$0xf]
  %v429 = vld [vmem:[%s425 + $0xc] sm:$0xf]
  %v430 = vld [vmem:[%s425 + $0x10] sm:$0xf]
  %v431 = vld [vmem:[%s425 + $0x14] sm:$0xf]
  %v432 = vld [vmem:[%s425 + $0x18] sm:$0xf]
  %v433 = vld [vmem:[%s425 + $0x1c] sm:$0xf]
  %v434 = vld [vmem:[%s425 + $0x20] sm:$0xf]
  %v435 = vld [vmem:[%s425 + $0x24] sm:$0xf]
  %v436 = vld [vmem:[%s425 + $0x28] sm:$0xf]
  %v437 = vld [vmem:[%s425 + $0x2c] sm:$0xf]
  %v438 = vld [vmem:[%s425 + $0x30] sm:$0xf]
  %v439 = vld [vmem:[%s425 + $0x34] sm:$0xf]
  %v440 = vld [vmem:[%s425 + $0x38] sm:$0xf]
  %v441 = vld [vmem:[%s425 + $0x3c] sm:$0xf]
  %v442 = vperm.slane %v281, 3
  %v459 = vunpack.c.l.b16 %v426
  %v460 = vunpack.c.l.b16 %v427
  %v461 = vunpack.c.l.b16 %v428
  %v462 = vunpack.c.l.b16 %v429
  %v463 = vunpack.c.l.b16 %v430
  %v464 = vunpack.c.l.b16 %v431
  %v465 = vunpack.c.l.b16 %v432
  %v466 = vunpack.c.l.b16 %v433
  %v467 = vunpack.c.l.b16 %v434
  %v468 = vunpack.c.l.b16 %v435
  %v469 = vunpack.c.l.b16 %v436
  %v470 = vunpack.c.l.b16 %v437
  %v471 = vunpack.c.l.b16 %v438
  %v472 = vunpack.c.l.b16 %v439
  %v473 = vunpack.c.l.b16 %v440
  %v474 = vunpack.c.l.b16 %v441
  %v475 = vpack.c.b16 %v460, %v459
  %v476 = vpack.c.b16 %v462, %v461
  %v477 = vpack.c.b16 %v464, %v463
  %v478 = vpack.c.b16 %v466, %v465
  %v479 = vpack.c.b16 %v468, %v467
  %v480 = vpack.c.b16 %v470, %v469
  %v481 = vpack.c.b16 %v472, %v471
  %v482 = vpack.c.b16 %v474, %v473
  %491 = vmatpush.bf16.msra.mxu0 %v482
  %492 = vmatpush.bf16.msra.mxu0 %v481
  %493 = vmatpush.bf16.msra.mxu0 %v480
  %494 = vmatpush.bf16.msra.mxu0 %v479
  %495 = vmatpush.bf16.msra.mxu0 %v478
  %496 = vmatpush.bf16.msra.mxu0 %v477
  %497 = vmatpush.bf16.msra.mxu0 %v476
  %498 = vmatpush.bf16.msra.mxu0 %v475
  %499 = vmatmul.bf16.gmra.mxu0 %v424
  %v500 = vpop.f32.mrf.mxu0
  %v501 = vadd.f32 %v442, %v500
  %v502 = vpop.f32.mrf.mxu0
  %v503 = vadd.f32 %v442, %v502
  %504 = vdwg.mxu0
  %v505 = vmax.f32 %v501, 0.0
  %v506 = vmax.f32 %v503, 0.0
  %v507 = vpack.c.bf16 %v506, %v505
  %s508 = scalar_lea.vmem %s4, 16
  %v509 = vld [vmem:[%s508] sm:$0xff]
  %510 = vmatpush.bf16.msra.mxu0 0
  %511 = vmatpush.bf16.msra.mxu0 0
  %512 = vmatpush.bf16.msra.mxu0 0
  %513 = vmatpush.bf16.msra.mxu0 0
  %514 = vmatpush.bf16.msra.mxu0 0
  %515 = vmatpush.bf16.msra.mxu0 0
  %516 = vmatpush.bf16.msra.mxu0 0
  %517 = vmatpush.bf16.msra.mxu0 %v507
  %518 = vmatmul.bf16.gmra.mxu0 %v44
  %v519 = vpop.f32.mrf.mxu0
  %v520 = vadd.f32 0.0, %v519
  %v521 = vpop.f32.mrf.mxu0
  %v522 = vadd.f32 0.0, %v521
  %523 = vdwg.mxu0
  %v524 = vpack.c.bf16 %v522, %v520
  %s525 = scalar_lea.vmem %s3, 128
  %v526 = vld [vmem:[%s525] sm:$0xf]
  %v527 = vld [vmem:[%s525 + $0x4] sm:$0xf]
  %v528 = vld [vmem:[%s525 + $0x8] sm:$0xf]
  %v529 = vld [vmem:[%s525 + $0xc] sm:$0xf]
  %v530 = vld [vmem:[%s525 + $0x10] sm:$0xf]
  %v531 = vld [vmem:[%s525 + $0x14] sm:$0xf]
  %v532 = vld [vmem:[%s525 + $0x18] sm:$0xf]
  %v533 = vld [vmem:[%s525 + $0x1c] sm:$0xf]
  %v534 = vld [vmem:[%s525 + $0x20] sm:$0xf]
  %v535 = vld [vmem:[%s525 + $0x24] sm:$0xf]
  %v536 = vld [vmem:[%s525 + $0x28] sm:$0xf]
  %v537 = vld [vmem:[%s525 + $0x2c] sm:$0xf]
  %v538 = vld [vmem:[%s525 + $0x30] sm:$0xf]
  %v539 = vld [vmem:[%s525 + $0x34] sm:$0xf]
  %v540 = vld [vmem:[%s525 + $0x38] sm:$0xf]
  %v541 = vld [vmem:[%s525 + $0x3c] sm:$0xf]
  %v542 = vperm.slane %v509, 0
  %v559 = vunpack.c.l.b16 %v526
  %v560 = vunpack.c.l.b16 %v527
  %v561 = vunpack.c.l.b16 %v528
  %v562 = vunpack.c.l.b16 %v529
  %v563 = vunpack.c.l.b16 %v530
  %v564 = vunpack.c.l.b16 %v531
  %v565 = vunpack.c.l.b16 %v532
  %v566 = vunpack.c.l.b16 %v533
  %v567 = vunpack.c.l.b16 %v534
  %v568 = vunpack.c.l.b16 %v535
  %v569 = vunpack.c.l.b16 %v536
  %v570 = vunpack.c.l.b16 %v537
  %v571 = vunpack.c.l.b16 %v538
  %v572 = vunpack.c.l.b16 %v539
  %v573 = vunpack.c.l.b16 %v540
  %v574 = vunpack.c.l.b16 %v541
  %v575 = vpack.c.b16 %v560, %v559
  %v576 = vpack.c.b16 %v562, %v561
  %v577 = vpack.c.b16 %v564, %v563
  %v578 = vpack.c.b16 %v566, %v565
  %v579 = vpack.c.b16 %v568, %v567
  %v580 = vpack.c.b16 %v570, %v569
  %v581 = vpack.c.b16 %v572, %v571
  %v582 = vpack.c.b16 %v574, %v573
  %591 = vmatpush.bf16.msra.mxu0 %v582
  %592 = vmatpush.bf16.msra.mxu0 %v581
  %593 = vmatpush.bf16.msra.mxu0 %v580
  %594 = vmatpush.bf16.msra.mxu0 %v579
  %595 = vmatpush.bf16.msra.mxu0 %v578
  %596 = vmatpush.bf16.msra.mxu0 %v577
  %597 = vmatpush.bf16.msra.mxu0 %v576
  %598 = vmatpush.bf16.msra.mxu0 %v575
  %599 = vmatmul.bf16.gmra.mxu0 %v524
  %v600 = vpop.f32.mrf.mxu0
  %v601 = vadd.f32 %v542, %v600
  %v602 = vpop.f32.mrf.mxu0
  %v603 = vadd.f32 %v542, %v602
  %604 = vdwg.mxu0
  %v605 = vmul.f32 %v601, %v143
  %v606 = vmul.f32 %v603, %v148
  %v607 = vadd.f32 %v605, %v606
  %v608 = vrot.slane %v607, 4
  %v609 = vadd.f32 %v607, %v608
  %v610 = vrot.slane %v609, 2
  %v611 = vadd.f32 %v609, %v610
  %v612 = vrot.slane %v611, 1
  %v613 = vadd.f32 %v611, %v612
  %v614 = vmul.f32 %v613, 0.0625
  %v615 = vmul.f32 %v605, %v605
  %v616 = vmul.f32 %v606, %v606
  %v617 = vadd.f32 %v615, %v616
  %v618 = vrot.slane %v617, 4
  %v619 = vadd.f32 %v617, %v618
  %v620 = vrot.slane %v619, 2
  %v621 = vadd.f32 %v619, %v620
  %v622 = vrot.slane %v621, 1
  %v623 = vadd.f32 %v621, %v622
  %v624 = vmul.f32 %v623, 0.0625
  %v625 = vmul.f32 %v614, %v614
  %v626 = vsub.f32 %v624, %v625
  %v627 = vadd.f32 %v626, 1e-05
  %v628 = vrsqrt.pop %v627
  %v629 = vmul.f32 %v628, %v627
  %v630 = vmul.f32 %v629, %v628
  %v631 = vmul.f32 0.5, %v630
  %v632 = vsub.f32 1.5, %v631
  %v633 = vmul.f32 %v628, %v632
  %vm634 = vweird.f32 %v627
  %vm635 = vweird.f32 %v628
  %vm636 = vmor %vm634, %vm635
  %v637 = vsel %vm636, %v628, %v633
  %v638 = vmul.f32 %v509, %v637
  %v639 = vmul.f32 %v614, %v638
  %v641 = vrot.slane %v639, 7
  %v643 = vsub.f32 %v509, %v641
  %v644 = vperm.slane %v638, 1
  %v645 = vmul.f32 %v605, %v644
  %v646 = vmul.f32 %v606, %v644
  %v647 = vperm.slane %v643, 2
  %v648 = vadd.f32 %v645, %v647
  %v649 = vadd.f32 %v646, %v647
  %v650 = vmax.f32 %v648, 0.0
  %v651 = vmax.f32 %v649, 0.0
  %v652 = vpack.c.bf16 %v651, %v650
  %s653 = scalar_lea.vmem %s5, 128
  %v654 = vld [vmem:[%s653] sm:$0xf]
  %v655 = vld [vmem:[%s653 + $0x4] sm:$0xf]
  %v656 = vld [vmem:[%s653 + $0x8] sm:$0xf]
  %v657 = vld [vmem:[%s653 + $0xc] sm:$0xf]
  %v658 = vld [vmem:[%s653 + $0x10] sm:$0xf]
  %v659 = vld [vmem:[%s653 + $0x14] sm:$0xf]
  %v660 = vld [vmem:[%s653 + $0x18] sm:$0xf]
  %v661 = vld [vmem:[%s653 + $0x1c] sm:$0xf]
  %v662 = vld [vmem:[%s653 + $0x20] sm:$0xf]
  %v663 = vld [vmem:[%s653 + $0x24] sm:$0xf]
  %v664 = vld [vmem:[%s653 + $0x28] sm:$0xf]
  %v665 = vld [vmem:[%s653 + $0x2c] sm:$0xf]
  %v666 = vld [vmem:[%s653 + $0x30] sm:$0xf]
  %v667 = vld [vmem:[%s653 + $0x34] sm:$0xf]
  %v668 = vld [vmem:[%s653 + $0x38] sm:$0xf]
  %v669 = vld [vmem:[%s653 + $0x3c] sm:$0xf]
  %v670 = vperm.slane %v509, 3
  %v687 = vunpack.c.l.b16 %v654
  %v688 = vunpack.c.l.b16 %v655
  %v689 = vunpack.c.l.b16 %v656
  %v690 = vunpack.c.l.b16 %v657
  %v691 = vunpack.c.l.b16 %v658
  %v692 = vunpack.c.l.b16 %v659
  %v693 = vunpack.c.l.b16 %v660
  %v694 = vunpack.c.l.b16 %v661
  %v695 = vunpack.c.l.b16 %v662
  %v696 = vunpack.c.l.b16 %v663
  %v697 = vunpack.c.l.b16 %v664
  %v698 = vunpack.c.l.b16 %v665
  %v699 = vunpack.c.l.b16 %v666
  %v700 = vunpack.c.l.b16 %v667
  %v701 = vunpack.c.l.b16 %v668
  %v702 = vunpack.c.l.b16 %v669
  %v703 = vpack.c.b16 %v688, %v687
  %v704 = vpack.c.b16 %v690, %v689
  %v705 = vpack.c.b16 %v692, %v691
  %v706 = vpack.c.b16 %v694, %v693
  %v707 = vpack.c.b16 %v696, %v695
  %v708 = vpack.c.b16 %v698, %v697
  %v709 = vpack.c.b16 %v700, %v699
  %v710 = vpack.c.b16 %v702, %v701
  %719 = vmatpush.bf16.msra.mxu0 %v710
  %720 = vmatpush.bf16.msra.mxu0 %v709
  %721 = vmatpush.bf16.msra.mxu0 %v708
  %722 = vmatpush.bf16.msra.mxu0 %v707
  %723 = vmatpush.bf16.msra.mxu0 %v706
  %724 = vmatpush.bf16.msra.mxu0 %v705
  %725 = vmatpush.bf16.msra.mxu0 %v704
  %726 = vmatpush.bf16.msra.mxu0 %v703
  %727 = vmatmul.bf16.gmra.mxu0 %v652
  %v728 = vpop.f32.mrf.mxu0
  %v729 = vadd.f32 %v670, %v728
  %v730 = vpop.f32.mrf.mxu0
  %v731 = vadd.f32 %v670, %v730
  %732 = vdwg.mxu0
  %733 = vst [vmem:[%s6] sm:$0xff] %v729
  %734 = vst [vmem:[%s6 + $0x8] sm:$0xff] %v731
  // Predicated region
  $region26: #{gin_forward.1} parent=0 // pred_check
    _
  $region27: #{gin_forward.1} parent=0 // pred_check_branch
    %736 = sbr.rel (0) target = $region29
  $region28: #{gin_forward.1} parent=0 // pred_region
    _
  $region29: #{gin_forward.1} parent=0 // pred_fallthru
    _
  // Predicated region
  $region30: #{gin_forward.1} parent=0 // pred_check
    _
  $region31: #{gin_forward.1} parent=0 // pred_check_branch
    %738 = sbr.rel (0) target = $region33
  $region32: #{gin_forward.1} parent=0 // pred_region
    _
  $region33: #{gin_forward.1} parent=0 // pred_fallthru
    _

</llo_original>
